<compile_context>
chip_gen: v6e
topology: v6e:2x2x1
jax: 0.10.0
libtpu: 0.0.40
codegen_flags: <defaults>
</compile_context>

<pallas_src>
import functools

import jax
import jax.numpy as jnp
from jax.experimental import pallas as pl
from jax.experimental.pallas import tpu as pltpu

NUM_KNOTS = 10
DEGREE = 3
NUM_BASIS = NUM_KNOTS - 1 - DEGREE  # 6


def _round_up(x, m):
    return (x + m - 1) // m * m


def kan_kernel(knots_ref, inv_den_ref, x_ref, w_ref, o_ref):
    """Compute one (TB, T_OUT) output block.

    knots_ref:   SMEM (NUM_KNOTS,)              shared spline knots
    inv_den_ref: SMEM (NUM_BASIS*DEGREE,)       precomputed 1/(knot[j+k]-knot[j])
    x_ref:       VMEM (TB, IN) f32              input tile (full IN)
    w_ref:       VMEM (NUM_BASIS*IN, T_OUT) bf16  fused weight slab (B-resident)
    o_ref:       VMEM (TB, T_OUT) f32
    """
    x = x_ref[...]                                   # (TB, IN) f32
    cols = []
    for j in range(NUM_BASIS):
        t = x - knots_ref[j]                         # hoisted: one subtract per basis
        prod = jnp.clip(t * inv_den_ref[j * DEGREE], 0.0, 1.0)
        for k in range(1, DEGREE):
            prod = prod * jnp.clip(t * inv_den_ref[j * DEGREE + k], 0.0, 1.0)
        cols.append(prod)
    # Fused basis tensor, j-major along K so it matches w's (j*IN + i) layout.
    basis = jnp.concatenate(cols, axis=-1).astype(jnp.bfloat16)   # (TB, 6*IN)
    # Single MXU matmul with K = 6*IN, f32 accumulation.
    o_ref[...] = jnp.dot(basis, w_ref[...],
                         preferred_element_type=jnp.float32).astype(o_ref.dtype)


def prepare_params(knots, coeffs):
    """One-time parameter prep (hoisted out of the per-call path).

    knots:  (NUM_KNOTS,) f32
    coeffs: (OUT, IN, NUM_KNOTS) f32 (per-activation AdaptiveSpline coeffs)
    Returns (knots_f32, inv_den, w_bf16) where
      w_bf16[j*IN + i, o] = coeffs[o, i, j], OUT padded to a multiple of 128.
    """
    OUT, IN, _ = coeffs.shape
    knots = knots.astype(jnp.float32)
    inv = [1.0 / (knots[j + k] - knots[j])
           for j in range(NUM_BASIS) for k in range(1, DEGREE + 1)]
    inv_den = jnp.stack(inv).astype(jnp.float32)                  # (18,)

    w = jnp.transpose(coeffs[:, :, :NUM_BASIS], (2, 1, 0))        # (6, IN, OUT)
    w = w.reshape(NUM_BASIS * IN, OUT)
    out_pad = _round_up(OUT, 128)                                 # lane-dense output
    w = jnp.pad(w, ((0, 0), (0, out_pad - OUT))).astype(jnp.bfloat16)
    return knots, inv_den, w


@functools.partial(jax.jit, static_argnames=("out_features",))
def kan_forward(x, knots, inv_den, w, *, out_features):
    """x: (B, IN) f32; knots/inv_den/w from prepare_params. Returns (B, OUT) f32."""
    B, IN = x.shape
    K, OUT_pad = w.shape
    assert K == NUM_BASIS * IN

    # Batch tiling (sublane axis): multiples of 8, capped at 256 rows per tile.
    if B <= 256:
        TB = _round_up(B, 8)
        B_pad = TB
    else:
        TB = 256
        B_pad = _round_up(B, TB)

    # Output tiling (lane axis): largest divisor of OUT_pad among {512,256,128}.
    T_OUT = 128
    for cand in (512, 256, 128):
        if OUT_pad % cand == 0:
            T_OUT = cand
            break

    x_p = x.astype(jnp.float32)
    if B_pad != B:
        x_p = jnp.pad(x_p, ((0, B_pad - B), (0, 0)))

    # OUT axis outer, B axis inner -> each weight slab is DMA'd once per OUT
    # tile and stays resident across all B tiles.
    grid = (OUT_pad // T_OUT, B_pad // TB)

    out = pl.pallas_call(
        kan_kernel,
        out_shape=jax.ShapeDtypeStruct((B_pad, OUT_pad), jnp.float32),
        grid=grid,
        in_specs=[
            pl.BlockSpec(memory_space=pltpu.MemorySpace.SMEM),      # knots
            pl.BlockSpec(memory_space=pltpu.MemorySpace.SMEM),      # inv_den
            pl.BlockSpec((TB, IN), lambda o, b: (b, 0)),            # x tile
            pl.BlockSpec((K, T_OUT), lambda o, b: (0, o)),          # weight slab
        ],
        out_specs=pl.BlockSpec((TB, T_OUT), lambda o, b: (b, o)),
        compiler_params=pltpu.CompilerParams(
            dimension_semantics=("parallel", "parallel"),
            vmem_limit_bytes=32 * 1024 * 1024,
        ),
    )(knots, inv_den, x_p, w)

    return out[:B, :out_features]


def kan_ref(x, knots, coeffs):
    """Pure-JAX f32 reference with identical math (for correctness check)."""
    basis = []
    for j in range(NUM_BASIS):
        p = jnp.ones_like(x)
        for k in range(1, DEGREE + 1):
            p = p * jnp.clip((x - knots[j]) / (knots[j + k] - knots[j]), 0.0, 1.0)
        basis.append(p)
    basis = jnp.stack(basis, axis=-1)                             # (B, IN, NUM_BASIS)
    return jnp.einsum("bjm,ijm->bi", basis, coeffs[:, :, :NUM_BASIS])


if __name__ == "__main__":
    B, IN, OUT = 8, 4, 8   # KANLayer(in_features=4, out_features=8), batch=8

    key = jax.random.PRNGKey(0)
    kx, kc = jax.random.split(key)

    x = jax.random.uniform(kx, (B, IN), jnp.float32, -1.0, 1.0)
    knots = jnp.linspace(-1.0, 1.0, NUM_KNOTS).astype(jnp.float32)     # shared at init
    coeffs = jax.random.normal(kc, (OUT, IN, NUM_KNOTS), jnp.float32)  # per-activation

    # One-time parameter prep (transpose/reshape/bf16 cast hoisted off the hot path).
    knots_p, inv_den, w = prepare_params(knots, coeffs)

    y = kan_forward(x, knots_p, inv_den, w, out_features=OUT)
    jax.block_until_ready(y)

    y_ref = kan_ref(x, knots, coeffs)
    assert y.shape == (B, OUT)
    # bf16 MXU operands (f32 accumulate) -> slightly looser tolerance than pure f32.
    assert jnp.allclose(y, y_ref, atol=5e-2, rtol=5e-2), "mismatch vs reference"

    print("KERNEL_OK")
</pallas_src>

<mosaic_0001>
module attributes {stable_mosaic.version = 11 : i64} {
  func.func @kan_kernel(%arg0: i32, %arg1: i32, %arg2: memref<10xf32, #tpu.memory_space<smem>>, %arg3: memref<18xf32, #tpu.memory_space<smem>>, %arg4: memref<8x4xf32, #tpu.memory_space<vmem>>, %arg5: memref<24x128xbf16, #tpu.memory_space<vmem>>, %arg6: memref<8x128xf32, #tpu.memory_space<vmem>>) attributes {dimension_semantics = [#tpu.dimension_semantics<parallel>, #tpu.dimension_semantics<parallel>], iteration_bounds = array<i64: 1, 1>, scalar_prefetch = 0 : i64, scratch_operands = 0 : i64, tpu.core_type = #tpu.core_type<tc>, window_params = [{transform_indices = @transform_0, window_bounds = array<i64: 10>}, {transform_indices = @transform_1, window_bounds = array<i64: 18>}, {transform_indices = @transform_2, window_bounds = array<i64: 8, 4>}, {transform_indices = @transform_3, window_bounds = array<i64: 24, 128>}, {transform_indices = @transform_4, window_bounds = array<i64: 8, 128>}]} {
    %c0 = arith.constant 0 : index
    %c0_0 = arith.constant 0 : index
    %0 = vector.load %arg4[%c0, %c0_0] : memref<8x4xf32, #tpu.memory_space<vmem>>, vector<8x4xf32>
    %c0_1 = arith.constant 0 : index
    %1 = memref.load %arg2[%c0_1] : memref<10xf32, #tpu.memory_space<smem>>
    %2 = vector.broadcast %1 : f32 to vector<8x4xf32>
    %3 = arith.subf %0, %2 : vector<8x4xf32>
    %c0_2 = arith.constant 0 : index
    %4 = memref.load %arg3[%c0_2] : memref<18xf32, #tpu.memory_space<smem>>
    %5 = vector.broadcast %4 : f32 to vector<8x4xf32>
    %6 = arith.mulf %3, %5 : vector<8x4xf32>
    %cst = arith.constant 0.000000e+00 : f32
    %cst_3 = arith.constant 1.000000e+00 : f32
    %7 = vector.broadcast %cst : f32 to vector<8x4xf32>
    %8 = arith.maximumf %7, %6 : vector<8x4xf32>
    %9 = vector.broadcast %cst_3 : f32 to vector<8x4xf32>
    %10 = arith.minimumf %9, %8 : vector<8x4xf32>
    %c1 = arith.constant 1 : index
    %11 = memref.load %arg3[%c1] : memref<18xf32, #tpu.memory_space<smem>>
    %12 = vector.broadcast %11 : f32 to vector<8x4xf32>
    %13 = arith.mulf %3, %12 : vector<8x4xf32>
    %cst_4 = arith.constant 0.000000e+00 : f32
    %cst_5 = arith.constant 1.000000e+00 : f32
    %14 = vector.broadcast %cst_4 : f32 to vector<8x4xf32>
    %15 = arith.maximumf %14, %13 : vector<8x4xf32>
    %16 = vector.broadcast %cst_5 : f32 to vector<8x4xf32>
    %17 = arith.minimumf %16, %15 : vector<8x4xf32>
    %18 = arith.mulf %10, %17 : vector<8x4xf32>
    %c2 = arith.constant 2 : index
    %19 = memref.load %arg3[%c2] : memref<18xf32, #tpu.memory_space<smem>>
    %20 = vector.broadcast %19 : f32 to vector<8x4xf32>
    %21 = arith.mulf %3, %20 : vector<8x4xf32>
    %cst_6 = arith.constant 0.000000e+00 : f32
    %cst_7 = arith.constant 1.000000e+00 : f32
    %22 = vector.broadcast %cst_6 : f32 to vector<8x4xf32>
    %23 = arith.maximumf %22, %21 : vector<8x4xf32>
    %24 = vector.broadcast %cst_7 : f32 to vector<8x4xf32>
    %25 = arith.minimumf %24, %23 : vector<8x4xf32>
    %26 = arith.mulf %18, %25 : vector<8x4xf32>
    %c1_8 = arith.constant 1 : index
    %27 = memref.load %arg2[%c1_8] : memref<10xf32, #tpu.memory_space<smem>>
    %28 = vector.broadcast %27 : f32 to vector<8x4xf32>
    %29 = arith.subf %0, %28 : vector<8x4xf32>
    %c3 = arith.constant 3 : index
    %30 = memref.load %arg3[%c3] : memref<18xf32, #tpu.memory_space<smem>>
    %31 = vector.broadcast %30 : f32 to vector<8x4xf32>
    %32 = arith.mulf %29, %31 : vector<8x4xf32>
    %cst_9 = arith.constant 0.000000e+00 : f32
    %cst_10 = arith.constant 1.000000e+00 : f32
    %33 = vector.broadcast %cst_9 : f32 to vector<8x4xf32>
    %34 = arith.maximumf %33, %32 : vector<8x4xf32>
    %35 = vector.broadcast %cst_10 : f32 to vector<8x4xf32>
    %36 = arith.minimumf %35, %34 : vector<8x4xf32>
    %c4 = arith.constant 4 : index
    %37 = memref.load %arg3[%c4] : memref<18xf32, #tpu.memory_space<smem>>
    %38 = vector.broadcast %37 : f32 to vector<8x4xf32>
    %39 = arith.mulf %29, %38 : vector<8x4xf32>
    %cst_11 = arith.constant 0.000000e+00 : f32
    %cst_12 = arith.constant 1.000000e+00 : f32
    %40 = vector.broadcast %cst_11 : f32 to vector<8x4xf32>
    %41 = arith.maximumf %40, %39 : vector<8x4xf32>
    %42 = vector.broadcast %cst_12 : f32 to vector<8x4xf32>
    %43 = arith.minimumf %42, %41 : vector<8x4xf32>
    %44 = arith.mulf %36, %43 : vector<8x4xf32>
    %c5 = arith.constant 5 : index
    %45 = memref.load %arg3[%c5] : memref<18xf32, #tpu.memory_space<smem>>
    %46 = vector.broadcast %45 : f32 to vector<8x4xf32>
    %47 = arith.mulf %29, %46 : vector<8x4xf32>
    %cst_13 = arith.constant 0.000000e+00 : f32
    %cst_14 = arith.constant 1.000000e+00 : f32
    %48 = vector.broadcast %cst_13 : f32 to vector<8x4xf32>
    %49 = arith.maximumf %48, %47 : vector<8x4xf32>
    %50 = vector.broadcast %cst_14 : f32 to vector<8x4xf32>
    %51 = arith.minimumf %50, %49 : vector<8x4xf32>
    %52 = arith.mulf %44, %51 : vector<8x4xf32>
    %c2_15 = arith.constant 2 : index
    %53 = memref.load %arg2[%c2_15] : memref<10xf32, #tpu.memory_space<smem>>
    %54 = vector.broadcast %53 : f32 to vector<8x4xf32>
    %55 = arith.subf %0, %54 : vector<8x4xf32>
    %c6 = arith.constant 6 : index
    %56 = memref.load %arg3[%c6] : memref<18xf32, #tpu.memory_space<smem>>
    %57 = vector.broadcast %56 : f32 to vector<8x4xf32>
    %58 = arith.mulf %55, %57 : vector<8x4xf32>
    %cst_16 = arith.constant 0.000000e+00 : f32
    %cst_17 = arith.constant 1.000000e+00 : f32
    %59 = vector.broadcast %cst_16 : f32 to vector<8x4xf32>
    %60 = arith.maximumf %59, %58 : vector<8x4xf32>
    %61 = vector.broadcast %cst_17 : f32 to vector<8x4xf32>
    %62 = arith.minimumf %61, %60 : vector<8x4xf32>
    %c7 = arith.constant 7 : index
    %63 = memref.load %arg3[%c7] : memref<18xf32, #tpu.memory_space<smem>>
    %64 = vector.broadcast %63 : f32 to vector<8x4xf32>
    %65 = arith.mulf %55, %64 : vector<8x4xf32>
    %cst_18 = arith.constant 0.000000e+00 : f32
    %cst_19 = arith.constant 1.000000e+00 : f32
    %66 = vector.broadcast %cst_18 : f32 to vector<8x4xf32>
    %67 = arith.maximumf %66, %65 : vector<8x4xf32>
    %68 = vector.broadcast %cst_19 : f32 to vector<8x4xf32>
    %69 = arith.minimumf %68, %67 : vector<8x4xf32>
    %70 = arith.mulf %62, %69 : vector<8x4xf32>
    %c8 = arith.constant 8 : index
    %71 = memref.load %arg3[%c8] : memref<18xf32, #tpu.memory_space<smem>>
    %72 = vector.broadcast %71 : f32 to vector<8x4xf32>
    %73 = arith.mulf %55, %72 : vector<8x4xf32>
    %cst_20 = arith.constant 0.000000e+00 : f32
    %cst_21 = arith.constant 1.000000e+00 : f32
    %74 = vector.broadcast %cst_20 : f32 to vector<8x4xf32>
    %75 = arith.maximumf %74, %73 : vector<8x4xf32>
    %76 = vector.broadcast %cst_21 : f32 to vector<8x4xf32>
    %77 = arith.minimumf %76, %75 : vector<8x4xf32>
    %78 = arith.mulf %70, %77 : vector<8x4xf32>
    %c3_22 = arith.constant 3 : index
    %79 = memref.load %arg2[%c3_22] : memref<10xf32, #tpu.memory_space<smem>>
    %80 = vector.broadcast %79 : f32 to vector<8x4xf32>
    %81 = arith.subf %0, %80 : vector<8x4xf32>
    %c9 = arith.constant 9 : index
    %82 = memref.load %arg3[%c9] : memref<18xf32, #tpu.memory_space<smem>>
    %83 = vector.broadcast %82 : f32 to vector<8x4xf32>
    %84 = arith.mulf %81, %83 : vector<8x4xf32>
    %cst_23 = arith.constant 0.000000e+00 : f32
    %cst_24 = arith.constant 1.000000e+00 : f32
    %85 = vector.broadcast %cst_23 : f32 to vector<8x4xf32>
    %86 = arith.maximumf %85, %84 : vector<8x4xf32>
    %87 = vector.broadcast %cst_24 : f32 to vector<8x4xf32>
    %88 = arith.minimumf %87, %86 : vector<8x4xf32>
    %c10 = arith.constant 10 : index
    %89 = memref.load %arg3[%c10] : memref<18xf32, #tpu.memory_space<smem>>
    %90 = vector.broadcast %89 : f32 to vector<8x4xf32>
    %91 = arith.mulf %81, %90 : vector<8x4xf32>
    %cst_25 = arith.constant 0.000000e+00 : f32
    %cst_26 = arith.constant 1.000000e+00 : f32
    %92 = vector.broadcast %cst_25 : f32 to vector<8x4xf32>
    %93 = arith.maximumf %92, %91 : vector<8x4xf32>
    %94 = vector.broadcast %cst_26 : f32 to vector<8x4xf32>
    %95 = arith.minimumf %94, %93 : vector<8x4xf32>
    %96 = arith.mulf %88, %95 : vector<8x4xf32>
    %c11 = arith.constant 11 : index
    %97 = memref.load %arg3[%c11] : memref<18xf32, #tpu.memory_space<smem>>
    %98 = vector.broadcast %97 : f32 to vector<8x4xf32>
    %99 = arith.mulf %81, %98 : vector<8x4xf32>
    %cst_27 = arith.constant 0.000000e+00 : f32
    %cst_28 = arith.constant 1.000000e+00 : f32
    %100 = vector.broadcast %cst_27 : f32 to vector<8x4xf32>
    %101 = arith.maximumf %100, %99 : vector<8x4xf32>
    %102 = vector.broadcast %cst_28 : f32 to vector<8x4xf32>
    %103 = arith.minimumf %102, %101 : vector<8x4xf32>
    %104 = arith.mulf %96, %103 : vector<8x4xf32>
    %c4_29 = arith.constant 4 : index
    %105 = memref.load %arg2[%c4_29] : memref<10xf32, #tpu.memory_space<smem>>
    %106 = vector.broadcast %105 : f32 to vector<8x4xf32>
    %107 = arith.subf %0, %106 : vector<8x4xf32>
    %c12 = arith.constant 12 : index
    %108 = memref.load %arg3[%c12] : memref<18xf32, #tpu.memory_space<smem>>
    %109 = vector.broadcast %108 : f32 to vector<8x4xf32>
    %110 = arith.mulf %107, %109 : vector<8x4xf32>
    %cst_30 = arith.constant 0.000000e+00 : f32
    %cst_31 = arith.constant 1.000000e+00 : f32
    %111 = vector.broadcast %cst_30 : f32 to vector<8x4xf32>
    %112 = arith.maximumf %111, %110 : vector<8x4xf32>
    %113 = vector.broadcast %cst_31 : f32 to vector<8x4xf32>
    %114 = arith.minimumf %113, %112 : vector<8x4xf32>
    %c13 = arith.constant 13 : index
    %115 = memref.load %arg3[%c13] : memref<18xf32, #tpu.memory_space<smem>>
    %116 = vector.broadcast %115 : f32 to vector<8x4xf32>
    %117 = arith.mulf %107, %116 : vector<8x4xf32>
    %cst_32 = arith.constant 0.000000e+00 : f32
    %cst_33 = arith.constant 1.000000e+00 : f32
    %118 = vector.broadcast %cst_32 : f32 to vector<8x4xf32>
    %119 = arith.maximumf %118, %117 : vector<8x4xf32>
    %120 = vector.broadcast %cst_33 : f32 to vector<8x4xf32>
    %121 = arith.minimumf %120, %119 : vector<8x4xf32>
    %122 = arith.mulf %114, %121 : vector<8x4xf32>
    %c14 = arith.constant 14 : index
    %123 = memref.load %arg3[%c14] : memref<18xf32, #tpu.memory_space<smem>>
    %124 = vector.broadcast %123 : f32 to vector<8x4xf32>
    %125 = arith.mulf %107, %124 : vector<8x4xf32>
    %cst_34 = arith.constant 0.000000e+00 : f32
    %cst_35 = arith.constant 1.000000e+00 : f32
    %126 = vector.broadcast %cst_34 : f32 to vector<8x4xf32>
    %127 = arith.maximumf %126, %125 : vector<8x4xf32>
    %128 = vector.broadcast %cst_35 : f32 to vector<8x4xf32>
    %129 = arith.minimumf %128, %127 : vector<8x4xf32>
    %130 = arith.mulf %122, %129 : vector<8x4xf32>
    %c5_36 = arith.constant 5 : index
    %131 = memref.load %arg2[%c5_36] : memref<10xf32, #tpu.memory_space<smem>>
    %132 = vector.broadcast %131 : f32 to vector<8x4xf32>
    %133 = arith.subf %0, %132 : vector<8x4xf32>
    %c15 = arith.constant 15 : index
    %134 = memref.load %arg3[%c15] : memref<18xf32, #tpu.memory_space<smem>>
    %135 = vector.broadcast %134 : f32 to vector<8x4xf32>
    %136 = arith.mulf %133, %135 : vector<8x4xf32>
    %cst_37 = arith.constant 0.000000e+00 : f32
    %cst_38 = arith.constant 1.000000e+00 : f32
    %137 = vector.broadcast %cst_37 : f32 to vector<8x4xf32>
    %138 = arith.maximumf %137, %136 : vector<8x4xf32>
    %139 = vector.broadcast %cst_38 : f32 to vector<8x4xf32>
    %140 = arith.minimumf %139, %138 : vector<8x4xf32>
    %c16 = arith.constant 16 : index
    %141 = memref.load %arg3[%c16] : memref<18xf32, #tpu.memory_space<smem>>
    %142 = vector.broadcast %141 : f32 to vector<8x4xf32>
    %143 = arith.mulf %133, %142 : vector<8x4xf32>
    %cst_39 = arith.constant 0.000000e+00 : f32
    %cst_40 = arith.constant 1.000000e+00 : f32
    %144 = vector.broadcast %cst_39 : f32 to vector<8x4xf32>
    %145 = arith.maximumf %144, %143 : vector<8x4xf32>
    %146 = vector.broadcast %cst_40 : f32 to vector<8x4xf32>
    %147 = arith.minimumf %146, %145 : vector<8x4xf32>
    %148 = arith.mulf %140, %147 : vector<8x4xf32>
    %c17 = arith.constant 17 : index
    %149 = memref.load %arg3[%c17] : memref<18xf32, #tpu.memory_space<smem>>
    %150 = vector.broadcast %149 : f32 to vector<8x4xf32>
    %151 = arith.mulf %133, %150 : vector<8x4xf32>
    %cst_41 = arith.constant 0.000000e+00 : f32
    %cst_42 = arith.constant 1.000000e+00 : f32
    %152 = vector.broadcast %cst_41 : f32 to vector<8x4xf32>
    %153 = arith.maximumf %152, %151 : vector<8x4xf32>
    %154 = vector.broadcast %cst_42 : f32 to vector<8x4xf32>
    %155 = arith.minimumf %154, %153 : vector<8x4xf32>
    %156 = arith.mulf %148, %155 : vector<8x4xf32>
    %157 = tpu.concatenate %26, %52, %78, %104, %130, %156 in 1 : vector<8x4xf32>, vector<8x4xf32>, vector<8x4xf32>, vector<8x4xf32>, vector<8x4xf32>, vector<8x4xf32> -> vector<8x24xf32>
    %158 = arith.truncf %157 : vector<8x24xf32> to vector<8x24xbf16>
    %c0_43 = arith.constant 0 : index
    %c0_44 = arith.constant 0 : index
    %159 = vector.load %arg5[%c0_43, %c0_44] : memref<24x128xbf16, #tpu.memory_space<vmem>>, vector<24x128xbf16>
    %cst_45 = arith.constant dense<0.000000e+00> : vector<8x128xf32>
    %160 = tpu.matmul %158, %159, %cst_45 {dimension_numbers = #tpu.dot_dimension_numbers<[1], [0], [0], [1], [0, 0, 1, 1], [], []>} : vector<8x24xbf16>, vector<24x128xbf16>, vector<8x128xf32> -> vector<8x128xf32>
    %c0_46 = arith.constant 0 : index
    %c0_47 = arith.constant 0 : index
    %161 = vector.load %arg6[%c0_46, %c0_47] : memref<8x128xf32, #tpu.memory_space<vmem>>, vector<8x128xf32>
    tpu.vector_store %arg6[%c0_46, %c0_47], %160 {strides = array<i32>} : memref<8x128xf32, #tpu.memory_space<vmem>>, vector<8x128xf32>,
    return
  }
  func.func @transform_0(%arg0: i32, %arg1: i32) -> i32 {
    %c0_i32 = arith.constant 0 : i32
    %c0_i32_0 = arith.constant 0 : i32
    return %c0_i32 : i32
  }
  func.func @transform_1(%arg0: i32, %arg1: i32) -> i32 {
    %c0_i32 = arith.constant 0 : i32
    %c0_i32_0 = arith.constant 0 : i32
    return %c0_i32 : i32
  }
  func.func @transform_2(%arg0: i32, %arg1: i32) -> (i32, i32) {
    %c0_i32 = arith.constant 0 : i32
    %c0_i32_0 = arith.constant 0 : i32
    return %arg1, %c0_i32 : i32, i32
  }
  func.func @transform_3(%arg0: i32, %arg1: i32) -> (i32, i32) {
    %c0_i32 = arith.constant 0 : i32
    %c0_i32_0 = arith.constant 0 : i32
    return %c0_i32, %arg0 : i32, i32
  }
  func.func @transform_4(%arg0: i32, %arg1: i32) -> (i32, i32) {
    %c0_i32 = arith.constant 0 : i32
    return %arg1, %arg0 : i32, i32
  }
}

</mosaic_0001>

<llo_original>
// kernel: kan_forward.1
$region0: #{kan_forward.1}
  #allocation0 [shape = 'u32[]', space=smem, size = 0x4, offset = 0x4, fixed_abs, tag = 'smem constant byte address 0x4 - core index']
  #allocation1 [shape = 'u32[144,128]{1,0:T(1,128)}', space=vmem, size = 0x12000, scoped, tag = 'internal scratch']
  %s0 = inlined_call_operand.vmem [shape: f32[10], index: 0, kind: input, shape index: {}]
  %s1 = inlined_call_operand.vmem [shape: f32[18], index: 1, kind: input, shape index: {}]
  %s2 = inlined_call_operand.vmem [shape: f32[8,4], index: 2, kind: input, shape index: {}]
  %s3 = inlined_call_operand.vmem [shape: bf16[24,128], index: 3, kind: input, shape index: {}]
  %s4 = inlined_call_operand.hbm [shape: f32[8,128], index: 4, kind: output, shape index: {}]
  %s5 = sld [smem:[#allocation0]]
  $region34: #{kan_forward.1} parent=0
    _
  %s7 = ssub.s32 1, %s5
  %s8 = scalar_select 0, %s7, %s5
  $region1: #{kan_forward.1} parent=0
    #allocation2 [shape = 'u8[512]{0}', space=smem, size = 0x200, scoped, tag = 'input window, operand 0, single buffered']
    #allocation3 [shape = 's32[1]{0}', space=sflag, size = 0x4, scoped, tag = 'scoped memory for kan_forward.1']
    #allocation4 [shape = 's32[1]{0}', space=sflag, size = 0x4, scoped, tag = 'scoped memory for kan_forward.1']
    #allocation5 [shape = 'u8[512]{0}', space=smem, size = 0x200, scoped, tag = 'input window, operand 1, single buffered']
    #allocation6 [shape = 's32[1]{0}', space=sflag, size = 0x4, scoped, tag = 'scoped memory for kan_forward.1']
    #allocation7 [shape = 'u8[4096]{0}', space=vmem, size = 0x1000, scoped, tag = 'output window, operand 0, single buffered']
    %9 = vsyncpa [#allocation4], 0
    %10 = vsyncpa [#allocation6], 0
    %11 = vsyncpa [#allocation3], 0
    // Predicated region
    $region2: #{kan_forward.1} parent=1 // pred_check
      _
    $region3: #{kan_forward.1} parent=1 // pred_check_branch
      %13 = sbr.rel (0) target = $region5
    $region4: #{kan_forward.1} parent=1 // pred_region
      %s15 = ssub.s32 16, 16
      %16 = vsyncadd [#allocation4], %s15
      %s18 = sshll.u32 %s0, 4
      %s19 = int_to_ptr.vmem [resolvable:$true] %s18
      %21 = dma.vmem_to_smem %s19, 16, [#allocation2], [#allocation4]
    $region5: #{kan_forward.1} parent=1 // pred_fallthru
      _
    // Predicated region
    $region6: #{kan_forward.1} parent=1 // pred_check
      _
    $region7: #{kan_forward.1} parent=1 // pred_check_branch
      %23 = sbr.rel (0) target = $region9
    $region8: #{kan_forward.1} parent=1 // pred_region
      %s25 = ssub.s32 16, 16
      %26 = vsyncadd [#allocation6], %s25
      %s28 = sshll.u32 %s1, 4
      %s29 = int_to_ptr.vmem [resolvable:$true] %s28
      %31 = dma.vmem_to_smem %s29, 16, [#allocation5], [#allocation6]
    $region9: #{kan_forward.1} parent=1 // pred_fallthru
      _
    // Predicated region
    $region10: #{kan_forward.1} parent=1 // pred_check
      _
    $region11: #{kan_forward.1} parent=1 // pred_check_branch
      %33 = sbr.rel (0) target = $region13
    $region12: #{kan_forward.1} parent=1 // pred_region
      _
    $region13: #{kan_forward.1} parent=1 // pred_fallthru
      _
    // Predicated region
    $region14: #{kan_forward.1} parent=1 // pred_check
      _
    $region15: #{kan_forward.1} parent=1 // pred_check_branch
      %35 = sbr.rel (0) target = $region17
    $region16: #{kan_forward.1} parent=1 // pred_region
      _
    $region17: #{kan_forward.1} parent=1 // pred_fallthru
      _
    // Predicated region
    $region18: #{kan_forward.1} parent=1 // pred_check
      _
    $region19: #{kan_forward.1} parent=1 // pred_check_branch
      %37 = sbr.rel (0) target = $region21
    $region20: #{kan_forward.1} parent=1 // pred_region
      %38 = dma.done [#allocation4], 16
    $region21: #{kan_forward.1} parent=1 // pred_fallthru
      _
    // Predicated region
    $region22: #{kan_forward.1} parent=1 // pred_check
      _
    $region23: #{kan_forward.1} parent=1 // pred_check_branch
      %40 = sbr.rel (0) target = $region25
    $region24: #{kan_forward.1} parent=1 // pred_region
      %41 = dma.done [#allocation6], 16
    $region25: #{kan_forward.1} parent=1 // pred_fallthru
      _
    %42 = sfence
    %v44 = vld [vmem:[%s2] sm:$0xff]
    %s45 = sld [smem:[#allocation2]]
    %v46 = vstv %s45
    %v47 = vsub.f32 %v44, %v46
    %s48 = sld [smem:[#allocation5]]
    %v49 = vstv %s48
    %v50 = vmul.f32 %v47, %v49
    %v51 = vmax.f32 %v50, 0.0
    %v52 = vmin.f32 %v51, 1.0
    %s53 = sld [smem:[#allocation5 + $0x1]]
    %v54 = vstv %s53
    %v55 = vmul.f32 %v47, %v54
    %v56 = vmax.f32 %v55, 0.0
    %v57 = vmin.f32 %v56, 1.0
    %v58 = vmul.f32 %v52, %v57
    %s59 = sld [smem:[#allocation5 + $0x2]]
    %v60 = vstv %s59
    %v61 = vmul.f32 %v47, %v60
    %v62 = vmax.f32 %v61, 0.0
    %v63 = vmin.f32 %v62, 1.0
    %v64 = vmul.f32 %v58, %v63
    %s65 = sld [smem:[#allocation2 + $0x1]]
    %v66 = vstv %s65
    %v67 = vsub.f32 %v44, %v66
    %s68 = sld [smem:[#allocation5 + $0x3]]
    %v69 = vstv %s68
    %v70 = vmul.f32 %v67, %v69
    %v71 = vmax.f32 %v70, 0.0
    %v72 = vmin.f32 %v71, 1.0
    %s73 = sld [smem:[#allocation5 + $0x4]]
    %v74 = vstv %s73
    %v75 = vmul.f32 %v67, %v74
    %v76 = vmax.f32 %v75, 0.0
    %v77 = vmin.f32 %v76, 1.0
    %v78 = vmul.f32 %v72, %v77
    %s79 = sld [smem:[#allocation5 + $0x5]]
    %v80 = vstv %s79
    %v81 = vmul.f32 %v67, %v80
    %v82 = vmax.f32 %v81, 0.0
    %v83 = vmin.f32 %v82, 1.0
    %v84 = vmul.f32 %v78, %v83
    %s85 = sld [smem:[#allocation2 + $0x2]]
    %v86 = vstv %s85
    %v87 = vsub.f32 %v44, %v86
    %s88 = sld [smem:[#allocation5 + $0x6]]
    %v89 = vstv %s88
    %v90 = vmul.f32 %v87, %v89
    %v91 = vmax.f32 %v90, 0.0
    %v92 = vmin.f32 %v91, 1.0
    %s93 = sld [smem:[#allocation5 + $0x7]]
    %v94 = vstv %s93
    %v95 = vmul.f32 %v87, %v94
    %v96 = vmax.f32 %v95, 0.0
    %v97 = vmin.f32 %v96, 1.0
    %v98 = vmul.f32 %v92, %v97
    %s99 = sld [smem:[#allocation5 + $0x8]]
    %v100 = vstv %s99
    %v101 = vmul.f32 %v87, %v100
    %v102 = vmax.f32 %v101, 0.0
    %v103 = vmin.f32 %v102, 1.0
    %v104 = vmul.f32 %v98, %v103
    %s105 = sld [smem:[#allocation2 + $0x3]]
    %v106 = vstv %s105
    %v107 = vsub.f32 %v44, %v106
    %s108 = sld [smem:[#allocation5 + $0x9]]
    %v109 = vstv %s108
    %v110 = vmul.f32 %v107, %v109
    %v111 = vmax.f32 %v110, 0.0
    %v112 = vmin.f32 %v111, 1.0
    %s113 = sld [smem:[#allocation5 + $0xa]]
    %v114 = vstv %s113
    %v115 = vmul.f32 %v107, %v114
    %v116 = vmax.f32 %v115, 0.0
    %v117 = vmin.f32 %v116, 1.0
    %v118 = vmul.f32 %v112, %v117
    %s119 = sld [smem:[#allocation5 + $0xb]]
    %v120 = vstv %s119
    %v121 = vmul.f32 %v107, %v120
    %v122 = vmax.f32 %v121, 0.0
    %v123 = vmin.f32 %v122, 1.0
    %v124 = vmul.f32 %v118, %v123
    %s125 = sld [smem:[#allocation2 + $0x4]]
    %v126 = vstv %s125
    %v127 = vsub.f32 %v44, %v126
    %s128 = sld [smem:[#allocation5 + $0xc]]
    %v129 = vstv %s128
    %v130 = vmul.f32 %v127, %v129
    %v131 = vmax.f32 %v130, 0.0
    %v132 = vmin.f32 %v131, 1.0
    %s133 = sld [smem:[#allocation5 + $0xd]]
    %v134 = vstv %s133
    %v135 = vmul.f32 %v127, %v134
    %v136 = vmax.f32 %v135, 0.0
    %v137 = vmin.f32 %v136, 1.0
    %v138 = vmul.f32 %v132, %v137
    %s139 = sld [smem:[#allocation5 + $0xe]]
    %v140 = vstv %s139
    %v141 = vmul.f32 %v127, %v140
    %v142 = vmax.f32 %v141, 0.0
    %v143 = vmin.f32 %v142, 1.0
    %v144 = vmul.f32 %v138, %v143
    %s145 = sld [smem:[#allocation2 + $0x5]]
    %v146 = vstv %s145
    %v147 = vsub.f32 %v44, %v146
    %s148 = sld [smem:[#allocation5 + $0xf]]
    %v149 = vstv %s148
    %v150 = vmul.f32 %v147, %v149
    %v151 = vmax.f32 %v150, 0.0
    %v152 = vmin.f32 %v151, 1.0
    %s153 = sld [smem:[#allocation5 + $0x10]]
    %v154 = vstv %s153
    %v155 = vmul.f32 %v147, %v154
    %v156 = vmax.f32 %v155, 0.0
    %v157 = vmin.f32 %v156, 1.0
    %v158 = vmul.f32 %v152, %v157
    %s159 = sld [smem:[#allocation5 + $0x11]]
    %v160 = vstv %s159
    %v161 = vmul.f32 %v147, %v160
    %v162 = vmax.f32 %v161, 0.0
    %v163 = vmin.f32 %v162, 1.0
    %v164 = vmul.f32 %v158, %v163
    %166 = vrot.lane.b32.xlu0 %v84, 4
    %v167 = vpop.permute.xlu0 %166
    %170 = vrot.lane.b32.xlu0 %v104, 8
    %v171 = vpop.permute.xlu0 %170
    %174 = vrot.lane.b32.xlu0 %v124, 12
    %v175 = vpop.permute.xlu0 %174
    %178 = vrot.lane.b32.xlu0 %v144, 16
    %v179 = vpop.permute.xlu0 %178
    %182 = vrot.lane.b32.xlu0 %v164, 20
    %v183 = vpop.permute.xlu0 %182
    %vm185 = vcmask 31744
    %v186 = vsel %vm185, %v64, %v167
    %vm187 = vcmask 64512
    %v188 = vsel %vm187, %v186, %v171
    %vm189 = vcmask 97280
    %v190 = vsel %vm189, %v188, %v175
    %vm191 = vcmask 130048
    %v192 = vsel %vm191, %v190, %v179
    %vm193 = vcmask 162816
    %v194 = vsel %vm193, %v192, %v183
    %v195 = vpack.c.bf16 %v194, %v194
    %v196 = vld [vmem:[%s3] sm:$0xf]
    %v197 = vld [vmem:[%s3 + $0x4] sm:$0xf]
    %v198 = vld [vmem:[%s3 + $0x8] sm:$0xf]
    %v202 = vunpack.c.l.b16 %v196
    %v203 = vunpack.c.l.b16 %v197
    %v204 = vunpack.c.l.b16 %v198
    %v205 = vpack.c.b16 %v203, %v202
    %v206 = vpack.c.b16 %v204, %v204
    %vm208 = vcmask 195584
    %v210 = vsel %vm208, %v195, 0
    %vm212 = vcmask 1043456
    %v214 = vsel %vm212, %v206, 0
    %216 = vmatprep.subr.bf16.mxu0 0
    %217 = vmatpush1.bf16.msra.mxu0 0
    %218 = vmatprep.subr.bf16.mxu0 0
    %219 = vmatpush1.bf16.msra.mxu0 0
    %220 = vmatprep.subr.bf16.mxu0 0
    %221 = vmatpush1.bf16.msra.mxu0 0
    %222 = vmatprep.subr.bf16.mxu0 0
    %223 = vmatpush1.bf16.msra.mxu0 0
    %224 = vmatprep.subr.bf16.mxu0 0
    %225 = vmatpush1.bf16.msra.mxu0 0
    %226 = vmatprep.subr.bf16.mxu0 0
    %227 = vmatpush1.bf16.msra.mxu0 0
    %228 = vmatprep.subr.bf16.mxu0 0
    %229 = vmatpush1.bf16.msra.mxu0 %v214
    %230 = vmatprep.subr.bf16.mxu0 0
    %231 = vmatpush1.bf16.msra.mxu0 %v205
    %232 = vmatprep.subr.bf16.mxu0 0
    %233 = vmatpush2.bf16.msra.mxu0 0
    %234 = vmatprep.subr.bf16.mxu0 0
    %235 = vmatpush2.bf16.msra.mxu0 0
    %236 = vmatprep.subr.bf16.mxu0 0
    %237 = vmatpush2.bf16.msra.mxu0 0
    %238 = vmatprep.subr.bf16.mxu0 0
    %239 = vmatpush2.bf16.msra.mxu0 0
    %240 = vmatprep.subr.bf16.mxu0 0
    %241 = vmatpush2.bf16.msra.mxu0 0
    %242 = vmatprep.subr.bf16.mxu0 0
    %243 = vmatpush2.bf16.msra.mxu0 0
    %244 = vmatprep.subr.bf16.mxu0 0
    %245 = vmatpush2.bf16.msra.mxu0 0
    %246 = vmatprep.subr.bf16.mxu0 0
    %247 = vmatpush2.bf16.msra.mxu0 0
    %248 = vmatprep.mubr.bf16.mxu0 0
    %249 = vmatmul.mubr.bf16.gmra.mxu0 %v210
    %v250 = vpop.f32.mrf.mxu0
    %v251 = vadd.f32 0.0, %v250
    %v252 = vpop.f32.mrf.mxu0
    %v253 = vpop.f32.mrf.mxu0
    %v254 = vpop.f32.mrf.mxu0
    %255 = vdwg.mxu0
    %256 = vst [vmem:[#allocation7] sm:$0xff] %v251
    // Predicated region
    $region26: #{kan_forward.1} parent=1 // pred_check
      _
    $region27: #{kan_forward.1} parent=1 // pred_check_branch
      %258 = sbr.rel (0) target = $region29
    $region28: #{kan_forward.1} parent=1 // pred_region
      %s260 = ssub.s32 128, 128
      %261 = vsyncadd [#allocation3], %s260
      %s263 = sshll.u32 [#allocation7], 4
      %s264 = int_to_ptr.vmem [resolvable:$true] %s263
      %266 = dma.vmem_to_hbm [thread:$0]  %s264, 128, %s4, [#allocation3]
    $region29: #{kan_forward.1} parent=1 // pred_fallthru
      _
    // Predicated region
    $region30: #{kan_forward.1} parent=1 // pred_check
      _
    $region31: #{kan_forward.1} parent=1 // pred_check_branch
      %268 = sbr.rel (0) target = $region33
    $region32: #{kan_forward.1} parent=1 // pred_region
      %269 = dma.done [#allocation3], 128
    $region33: #{kan_forward.1} parent=1 // pred_fallthru
      _
    %270 = vsyncpa [#allocation3], 1
    %271 = vsyncpa [#allocation4], 1
    %272 = vsyncpa [#allocation6], 1

</llo_original>
